<compile_context>
chip_gen: v7x
topology: tpu7x:2x2x1
jax: 0.10.0
libtpu: 0.0.40
codegen_flags: <defaults>
</compile_context>

<pallas_src>
import functools

import jax
import jax.numpy as jnp
from jax import lax
from jax.experimental import pallas as pl
from jax.experimental.pallas import tpu as pltpu


def _encoding_kernel(x_ref, scw_ref, acc_ref, *, n_total, nt_inner, approx_recip):
    # x_ref:   (1, C, TN)     current N-tile of the current batch (points on lanes)
    # scw_ref: (K, C+2)       [-2*scale*cw | scale*||cw||^2 | scale]   (resident)
    # acc_ref: (1, 1, K, C+2) resident accumulator:
    #            [..., k, c<C ] = sum_n A[k,n] * x[c,n]
    #            [..., k, C   ] = sum_n A[k,n]                (asum)
    #            [..., k, C+1 ] = sum_n A[k,n] * ||x_n||^2    (byproduct, ignored)
    s = pl.program_id(1)
    t = pl.program_id(2)

    @pl.when(t == 0)
    def _init():
        acc_ref[...] = jnp.zeros_like(acc_ref)

    x = x_ref[0]                                         # (C, TN) f32
    tn = x.shape[-1]

    partial_tile = (n_total % tn) != 0                   # static python bool
    if partial_tile:
        # Only reached when no lane-aligned divisor of N exists (rare).  The
        # valid row doubles as the asum mask, so only x needs the select.
        col = lax.broadcasted_iota(jnp.int32, (1, tn), 1) + (s * nt_inner + t) * tn
        valid = col < n_total                            # (1, TN)
        x = jnp.where(valid, x, 0.0)
        ones = valid.astype(jnp.float32)
    else:
        ones = jnp.ones((1, tn), jnp.float32)

    x_sq = jnp.sum(x * x, axis=0, keepdims=True)         # (1, TN)
    x_aug = jnp.concatenate([x, ones, x_sq], axis=0)     # (C+2, TN)

    # Scaled squared distances entirely on the MXU (canonical NN matmul).
    logits = lax.dot_general(scw_ref[...], x_aug,
                             dimension_numbers=(((1,), (0,)), ((), ())),
                             preferred_element_type=jnp.float32)    # (K, TN)

    # Softmax over the code axis (sublanes): XLU reductions + EUP exp / rcp.
    logits = logits - jnp.max(logits, axis=0, keepdims=True)
    expv = jnp.exp(logits)
    denom = jnp.sum(expv, axis=0, keepdims=True)                    # (1, TN)
    assign = expv * pl.reciprocal(denom, approx=approx_recip)       # (K, TN)

    # Aggregation + asum in one matmul; assign is the LHS so the large (K, TN)
    # operand keeps its layout (any inserted transpose is of the tiny x_aug).
    contrib = lax.dot_general(assign, x_aug,
                              dimension_numbers=(((1,), (1,)), ((), ())),
                              preferred_element_type=jnp.float32)   # (K, C+2)
    acc_ref[...] += contrib[None, None]


def _pick_n_tile(n, cap=8192):
    """Largest N-tile <= cap that is a 128-multiple dividing N (or all of N).

    Per-column working set ~= 2*C*4 B (double-buffered x tile) + ~3*K*4 B of
    live (K, TN) f32 softmax temporaries ~= 0.8 KiB (C=4, K=64), so cap=8192
    keeps the kernel under ~8 MiB of VMEM on every TPU generation (v5e/v6e/v7x)
    while staying large enough (>= 512) that the ~0.35 us per-grid-step
    overhead is negligible.
    """
    if n <= cap:
        return n                        # full-extent block is always layout-legal
    for m in range(cap, 127, -128):
        if n % m == 0:
            return m
    return cap                           # fall back to a masked partial last tile


def encoding_forward(x_nchw, codewords, scale, *, approx_reciprocal=True):
    """x_nchw: (B, C, W, H); codewords: (K, C); scale: (K,). Returns (B, K, C)."""
    b, c, w, h = x_nchw.shape
    k = codewords.shape[0]
    n = w * h

    x_bcn = x_nchw.reshape(b, c, n).astype(jnp.float32)    # free view of NCHW
    cw = codewords.astype(jnp.float32)
    sc = scale.astype(jnp.float32)

    # Augmented codeword matrix (tiny, resident in VMEM).  Columns [0:C) pair
    # with the x rows of x_aug, column C with the ones/valid row, column C+1
    # with the ||x||^2 row.
    scw_aug = jnp.concatenate(
        [(-2.0 * sc)[:, None] * cw,                        # (K, C)
         (sc * jnp.sum(cw * cw, axis=1))[:, None],         # (K, 1)  scale*||cw||^2
         sc[:, None]],                                      # (K, 1)  scale
        axis=1)                                             # (K, C+2)

    tn = _pick_n_tile(n)
    nt = pl.cdiv(n, tn)

    # Split the N reduction into NS=2 independent parallel chunks (combined in
    # the epilogue) so v7x's second TensorCore is busy even when B == 1.
    ns = 2 if nt % 2 == 0 else 1
    nt_inner = nt // ns

    kernel = functools.partial(_encoding_kernel, n_total=n, nt_inner=nt_inner,
                               approx_recip=approx_reciprocal)

    acc = pl.pallas_call(
        kernel,
        out_shape=jax.ShapeDtypeStruct((b, ns, k, c + 2), jnp.float32),
        grid_spec=pltpu.PrefetchScalarGridSpec(
            num_scalar_prefetch=0,
            grid=(b, ns, nt_inner),                          # reduction axis last
            in_specs=[
                pl.BlockSpec((1, c, tn),
                             lambda i, s, t: (i, 0, s * nt_inner + t)),
                pl.BlockSpec((k, c + 2), lambda i, s, t: (0, 0)),    # resident
            ],
            out_specs=pl.BlockSpec((1, 1, k, c + 2),
                                   lambda i, s, t: (i, s, 0, 0)),    # accumulator
        ),
        compiler_params=pltpu.CompilerParams(
            dimension_semantics=("parallel", "parallel", "arbitrary"),
            vmem_limit_bytes=32 * 1024 * 1024),
    )(x_bcn, scw_aug)

    # Tiny O(B*K*C) epilogue in XLA: combine the N-split partials, read asum
    # from column C, subtract (sum_n A[n,k]) * cw[k,c].  Already (B, K, C).
    total = jnp.sum(acc, axis=1)                             # (B, K, C+2)
    return total[..., :c] - total[..., c:c + 1] * cw[None, :, :]


def encoding_reference(x_nchw, codewords, scale):
    """Pure-JAX reference mirroring the PyTorch module, for verification."""
    b, c, w, h = x_nchw.shape
    x = jnp.transpose(x_nchw.reshape(b, c, -1), (0, 2, 1))             # (B, N, C)
    diff = x[:, :, None, :] - codewords[None, None, :, :]               # (B, N, K, C)
    sl2 = scale[None, None, :] * jnp.sum(diff * diff, axis=3)           # (B, N, K)
    aw = jax.nn.softmax(sl2, axis=2)                                    # (B, N, K)
    return jnp.sum(aw[..., None] * diff, axis=1)                        # (B, K, C)


if __name__ == "__main__":
    key = jax.random.PRNGKey(0)
    k_x, k_cw, k_sc = jax.random.split(key, 3)

    batch, in_channels, width, height = 2, 4, 16, 16
    num_codes = 64  # Encoding.__init__ hard-codes num_codes = 64

    std = 1.0 / (num_codes * in_channels) ** 0.5
    codewords = jax.random.uniform(
        k_cw, (num_codes, in_channels), minval=-std, maxval=std, dtype=jnp.float32)
    scale = jax.random.uniform(
        k_sc, (num_codes,), minval=-1.0, maxval=0.0, dtype=jnp.float32)
    x = jax.random.normal(k_x, (batch, in_channels, width, height), dtype=jnp.float32)

    out = jax.block_until_ready(encoding_forward(x, codewords, scale))
    ref = encoding_reference(x, codewords, scale)

    assert out.shape == (batch, num_codes, in_channels)
    # Tolerance covers the approximate EUP reciprocal used for the softmax
    # normalization; approx_reciprocal=False tightens this to ~1e-5.
    assert jnp.allclose(out, ref, atol=3e-3, rtol=3e-3), \
        float(jnp.max(jnp.abs(out - ref)))

    print("KERNEL_OK")
</pallas_src>

<mosaic_0001>
module attributes {stable_mosaic.version = 11 : i64} {
  func.func @_encoding_kernel(%arg0: i32, %arg1: i32, %arg2: i32, %arg3: memref<1x4x256xf32, #tpu.memory_space<vmem>>, %arg4: memref<64x6xf32, #tpu.memory_space<vmem>>, %arg5: memref<1x1x64x6xf32, #tpu.memory_space<vmem>>) attributes {dimension_semantics = [#tpu.dimension_semantics<parallel>, #tpu.dimension_semantics<parallel>, #tpu.dimension_semantics<arbitrary>], iteration_bounds = array<i64: 2, 1, 1>, scalar_prefetch = 0 : i64, scratch_operands = 0 : i64, tpu.core_type = #tpu.core_type<tc>, window_params = [{transform_indices = @transform_0, window_bounds = array<i64: 1, 4, 256>}, {pipeline_mode = #tpu.pipeline_mode<synchronous>, transform_indices = @transform_1, window_bounds = array<i64: 64, 6>}, {transform_indices = @transform_2, window_bounds = array<i64: 1, 1, 64, 6>}]} {
    %c0_i32 = arith.constant 0 : i32
    %0 = arith.cmpi eq, %arg2, %c0_i32 : i32
    %1 = arith.extui %0 : i1 to i32
    %c0_i32_0 = arith.constant 0 : i32
    %2 = arith.cmpi ne, %1, %c0_i32_0 : i32
    scf.if %2 {
      %cst_18 = arith.constant 0.000000e+00 : f32
      %27 = vector.broadcast %cst_18 : f32 to vector<1x1x64x6xf32>
      %c0_19 = arith.constant 0 : index
      %c0_20 = arith.constant 0 : index
      %c0_21 = arith.constant 0 : index
      %c0_22 = arith.constant 0 : index
      %28 = vector.load %arg5[%c0_19, %c0_20, %c0_21, %c0_22] : memref<1x1x64x6xf32, #tpu.memory_space<vmem>>, vector<1x1x64x6xf32>
      tpu.vector_store %arg5[%c0_19, %c0_20, %c0_21, %c0_22], %27 {strides = array<i32>} : memref<1x1x64x6xf32, #tpu.memory_space<vmem>>, vector<1x1x64x6xf32>,
    } else {
    }
    %c0 = arith.constant 0 : index
    %c0_1 = arith.constant 0 : index
    %c0_2 = arith.constant 0 : index
    %3 = vector.load %arg3[%c0, %c0_1, %c0_2] : memref<1x4x256xf32, #tpu.memory_space<vmem>>, vector<1x4x256xf32>
    %4 = vector.shape_cast %3 : vector<1x4x256xf32> to vector<4x256xf32>
    %cst = arith.constant 1.000000e+00 : f32
    %5 = vector.broadcast %cst : f32 to vector<1x256xf32>
    %6 = arith.mulf %4, %4 : vector<4x256xf32>
    %cst_3 = arith.constant dense<0.000000e+00> : vector<256xf32>
    %7 = vector.multi_reduction <add>, %6, %cst_3 [0] : vector<4x256xf32> to vector<256xf32>
    %8 = vector.shape_cast %7 : vector<256xf32> to vector<1x256xf32>
    %9 = tpu.concatenate %4, %5, %8 in 0 : vector<4x256xf32>, vector<1x256xf32>, vector<1x256xf32> -> vector<6x256xf32>
    %c0_4 = arith.constant 0 : index
    %c0_5 = arith.constant 0 : index
    %10 = vector.load %arg4[%c0_4, %c0_5] : memref<64x6xf32, #tpu.memory_space<vmem>>, vector<64x6xf32>
    %cst_6 = arith.constant dense<0.000000e+00> : vector<64x256xf32>
    %11 = tpu.matmul %10, %9, %cst_6 {dimension_numbers = #tpu.dot_dimension_numbers<[1], [0], [0], [1], [0, 0, 1, 1], [], []>} : vector<64x6xf32>, vector<6x256xf32>, vector<64x256xf32> -> vector<64x256xf32>
    %cst_7 = arith.constant dense<0xFF800000> : vector<256xf32>
    %12 = vector.multi_reduction <maximumf>, %11, %cst_7 [0] : vector<64x256xf32> to vector<256xf32>
    %13 = vector.shape_cast %12 : vector<256xf32> to vector<1x256xf32>
    %14 = vector.broadcast %13 : vector<1x256xf32> to vector<64x256xf32>
    %15 = arith.subf %11, %14 : vector<64x256xf32>
    %16 = math.exp %15 : vector<64x256xf32>
    %cst_8 = arith.constant dense<0.000000e+00> : vector<256xf32>
    %17 = vector.multi_reduction <add>, %16, %cst_8 [0] : vector<64x256xf32> to vector<256xf32>
    %18 = vector.shape_cast %17 : vector<256xf32> to vector<1x256xf32>
    %19 = tpu.reciprocal %18 {approx = true} : vector<1x256xf32> -> vector<1x256xf32>
    %20 = vector.broadcast %19 : vector<1x256xf32> to vector<64x256xf32>
    %21 = arith.mulf %16, %20 : vector<64x256xf32>
    %cst_9 = arith.constant dense<0.000000e+00> : vector<64x6xf32>
    %22 = tpu.matmul %21, %9, %cst_9 {dimension_numbers = #tpu.dot_dimension_numbers<[1], [1], [0], [0], [0, 0, 1, 0], [], []>} : vector<64x256xf32>, vector<6x256xf32>, vector<64x6xf32> -> vector<64x6xf32>
    %c0_10 = arith.constant 0 : index
    %c0_11 = arith.constant 0 : index
    %c0_12 = arith.constant 0 : index
    %c0_13 = arith.constant 0 : index
    %23 = vector.load %arg5[%c0_10, %c0_11, %c0_12, %c0_13] : memref<1x1x64x6xf32, #tpu.memory_space<vmem>>, vector<1x1x64x6xf32>
    %24 = vector.shape_cast %22 : vector<64x6xf32> to vector<1x1x64x6xf32>
    %25 = arith.addf %23, %24 : vector<1x1x64x6xf32>
    %c0_14 = arith.constant 0 : index
    %c0_15 = arith.constant 0 : index
    %c0_16 = arith.constant 0 : index
    %c0_17 = arith.constant 0 : index
    %26 = vector.load %arg5[%c0_14, %c0_15, %c0_16, %c0_17] : memref<1x1x64x6xf32, #tpu.memory_space<vmem>>, vector<1x1x64x6xf32>
    tpu.vector_store %arg5[%c0_14, %c0_15, %c0_16, %c0_17], %25 {strides = array<i32>} : memref<1x1x64x6xf32, #tpu.memory_space<vmem>>, vector<1x1x64x6xf32>,
    return
  }
  func.func @transform_0(%arg0: i32, %arg1: i32, %arg2: i32) -> (i32, i32, i32) {
    %c1_i32 = arith.constant 1 : i32
    %0 = arith.muli %arg1, %c1_i32 : i32
    %1 = arith.addi %0, %arg2 : i32
    %c0_i32 = arith.constant 0 : i32
    %c0_i32_0 = arith.constant 0 : i32
    return %arg0, %c0_i32, %1 : i32, i32, i32
  }
  func.func @transform_1(%arg0: i32, %arg1: i32, %arg2: i32) -> (i32, i32) {
    %c0_i32 = arith.constant 0 : i32
    %c0_i32_0 = arith.constant 0 : i32
    %c0_i32_1 = arith.constant 0 : i32
    return %c0_i32, %c0_i32_0 : i32, i32
  }
  func.func @transform_2(%arg0: i32, %arg1: i32, %arg2: i32) -> (i32, i32, i32, i32) {
    %c0_i32 = arith.constant 0 : i32
    %c0_i32_0 = arith.constant 0 : i32
    %c0_i32_1 = arith.constant 0 : i32
    return %arg0, %arg1, %c0_i32, %c0_i32_0 : i32, i32, i32, i32
  }
}

</mosaic_0001>

<llo_original>
// kernel: tpu_custom_call.1
$region0: #{tpu_custom_call.1}
  #allocation0 [shape = 'u32[]', space=smem, size = 0x4, offset = 0x4, fixed_abs, tag = 'smem constant byte address 0x4 - core index']
  #allocation1 [shape = 'u32[144,128]{1,0:T(1,128)}', space=vmem, size = 0x12000, scoped, tag = 'internal scratch']
  %s0 = inlined_call_operand.vmem [shape: f32[2,4,256], index: 0, kind: input, shape index: {}]
  %s1 = inlined_call_operand.vmem [shape: f32[64,6], index: 1, kind: input, shape index: {}]
  %s2 = inlined_call_operand.vmem [shape: f32[2,1,64,6], index: 2, kind: output, shape index: {}]
  %s3 = sld [smem:[#allocation0]]
  $region45: #{tpu_custom_call.1} parent=0
    _
  %s5 = ssub.s32 1, %s3
  %s6 = scalar_select 0, %s5, %s3
  loop: start=0, step=1, limit=4
  $region2: #{tpu_custom_call.1} parent=0 // loop_pre_header
    _
  $region3: #{tpu_custom_call.1} parent=0 // loop_header
    %s8 = sphi 0, %s12
    %p9 = scmp.ge.s32.totalorder %s8, 4
    %s15 = sphi 0, %s34
    %s16 = sphi 0, %s30
    %s17 = sphi 0, %s26
    %s18 = sphi 0, %s15
    %s19 = sphi 0, %s16
    %s20 = sphi 0, %s17
    %s21 = sphi 0, %s18
    %s22 = sphi 0, %s19
    %s23 = sphi 0, %s20
    %s41 = sphi 0, %s43
    %s44 = sphi 0, %s41
    %s45 = sphi 0, %s44
    %s61 = sphi 0, %s45
    %s65 = sphi 0, %s65
    %s67 = sphi 0, %s65
    %s68 = sphi 0, %s67
    %s82 = sphi 0, %s68
    %s90 = sphi 0, %s92
    %s93 = sphi 0, %s90
    %s94 = sphi 0, %s93
    %s110 = sphi 0, %s94
  $region4: #{tpu_custom_call.1} parent=0 // loop_header_branch
    %11 = sbr.rel (%p9) target = $region8
  $region5: #{tpu_custom_call.1} parent=0 // loop_body
    %s13 = ssub.s32 %s8, 1
    %s14 = ssub.s32 %s8, 2
    %s24 = sadd.s32 1, %s17
    %p25 = scmp.ge.s32.totalorder %s24, 1
    %s26 = scalar_select %p25, 0, %s24
    %s27 = sadd.s32 1, %s16
    %s28 = scalar_select %p25, %s27, %s16
    %p29 = scmp.ge.s32.totalorder %s28, 1
    %s30 = scalar_select %p29, 0, %s28
    %s31 = sadd.s32 1, %s15
    %s32 = scalar_select %p29, %s31, %s15
    %p33 = scmp.ge.s32.totalorder %s32, 2
    %s34 = scalar_select %p33, 0, %s32
    %s35 = sadd.s32 %s16, %s17
    %s36 = sadd.s32 %s30, %s26
    %s37 = ssub.s32 %s15, %s34
    %s38 = ssub.s32 %s35, %s36
    %s39 = sor.u32 %s37, %s38
    %p40 = scmp.eq.s32.totalorder %s39, 0
    %s42 = sadd.s32 %s41, 1
    %s43 = scalar_select %p40, %s41, %s42
    %p46 = pneg %p40
    %p47 = scmp.eq.s32.totalorder %s8, 1
    %p48 = por %p46, %p47
    %p49 = scmp.ne.s32.totalorder %s41, %s44
    %p50 = scmp.eq.s32.totalorder %s8, 0
    %p51 = por %p49, %p50
    %p52 = scmp.ne.s32.totalorder %s41, %s44
    %p53 = scmp.eq.s32.totalorder %s13, 1
    %p54 = por %p52, %p53
    %p55 = scmp.ne.s32.totalorder %s44, %s45
    %p56 = scmp.eq.s32.totalorder %s13, 0
    %p57 = por %p55, %p56
    %p58 = scmp.ne.s32.totalorder %s44, %s45
    %p59 = scmp.eq.s32.totalorder %s14, 1
    %p60 = por %p58, %p59
    %p62 = scmp.ne.s32.totalorder %s45, %s61
    %p63 = scmp.eq.s32.totalorder %s14, 0
    %p64 = por %p62, %p63
    %s66 = sadd.s32 %s65, 1
    %p69 = scmp.eq.s32.totalorder %s8, 1
    %p70 = scmp.ne.s32.totalorder %s65, %s67
    %p71 = scmp.eq.s32.totalorder %s8, 0
    %p72 = por %p70, %p71
    %p73 = scmp.ne.s32.totalorder %s65, %s67
    %p74 = scmp.eq.s32.totalorder %s13, 1
    %p75 = por %p73, %p74
    %p76 = scmp.ne.s32.totalorder %s67, %s68
    %p77 = scmp.eq.s32.totalorder %s13, 0
    %p78 = por %p76, %p77
    %p79 = scmp.ne.s32.totalorder %s67, %s68
    %p80 = scmp.eq.s32.totalorder %s14, 1
    %p81 = por %p79, %p80
    %p83 = scmp.ne.s32.totalorder %s68, %s82
    %p84 = scmp.eq.s32.totalorder %s14, 0
    %p85 = por %p83, %p84
    %s86 = ssub.s32 %s15, %s34
    %s87 = ssub.s32 %s16, %s30
    %s88 = sor.u32 %s86, %s87
    %p89 = scmp.eq.s32.totalorder %s88, 0
    %s91 = sadd.s32 %s90, 1
    %s92 = scalar_select %p89, %s90, %s91
    %p95 = pneg %p89
    %p96 = scmp.eq.s32.totalorder %s8, 1
    %p97 = por %p95, %p96
    %p98 = scmp.ne.s32.totalorder %s90, %s93
    %p99 = scmp.eq.s32.totalorder %s8, 0
    %p100 = por %p98, %p99
    %p101 = scmp.ne.s32.totalorder %s90, %s93
    %p102 = scmp.eq.s32.totalorder %s13, 1
    %p103 = por %p101, %p102
    %p104 = scmp.ne.s32.totalorder %s93, %s94
    %p105 = scmp.eq.s32.totalorder %s13, 0
    %p106 = por %p104, %p105
    %p107 = scmp.ne.s32.totalorder %s93, %s94
    %p108 = scmp.eq.s32.totalorder %s14, 1
    %p109 = por %p107, %p108
    %p111 = scmp.ne.s32.totalorder %s94, %s110
    %p112 = scmp.eq.s32.totalorder %s14, 0
    %p113 = por %p111, %p112
    %p114 = scmp.le.s32.totalorder 1, %s8
    %p115 = scmp.lt.s32.totalorder %s8, 3
    %p116 = pnand %p114, %p115
    %p117 = pneg %p116
    // Predicated region
    $region9: #{tpu_custom_call.1} parent=5 // pred_check
      _
    $region10: #{tpu_custom_call.1} parent=5 // pred_check_branch
      %119 = sbr.rel (%p116) target = $region12
    $region11: #{tpu_custom_call.1} parent=5 // pred_region
      %s120 = ssub.s32 %s8, 1
      // Predicated region
      $region13: #{tpu_custom_call.1} parent=11 // pred_check
        %p121 = pneg %p78
      $region14: #{tpu_custom_call.1} parent=11 // pred_check_branch
        %123 = sbr.rel (%p121) target = $region16
      $region15: #{tpu_custom_call.1} parent=11 // pred_region
        _
      $region16: #{tpu_custom_call.1} parent=11 // pred_fallthru
        _
    $region12: #{tpu_custom_call.1} parent=5 // pred_fallthru
      _
    %p124 = scmp.lt.s32.totalorder %s8, 2
    // Predicated region
    $region17: #{tpu_custom_call.1} parent=5 // pred_check
      %p125 = pneg %p124
    $region18: #{tpu_custom_call.1} parent=5 // pred_check_branch
      %127 = sbr.rel (%p125) target = $region20
    $region19: #{tpu_custom_call.1} parent=5 // pred_region
      // Predicated region
      $region21: #{tpu_custom_call.1} parent=19 // pred_check
        %p128 = pneg %p51
      $region22: #{tpu_custom_call.1} parent=19 // pred_check_branch
        %130 = sbr.rel (%p128) target = $region24
      $region23: #{tpu_custom_call.1} parent=19 // pred_region
        %s131 = sadd.s32 %s16, %s17
        %s132 = smul.u32 2, %s131
        %p133 = scmp.lt.s32.totalorder %s15, 1
        %s134 = scalar_select %p133, %s15, 1
        %p135 = scmp.lt.s32.totalorder %s132, 1
        %s136 = scalar_select %p135, %s132, 1
        %s137 = smul.addr %s134, 2
        %s138 = sadd.s32 %s136, %s137
        %s139 = smul.addr %s138, 4
        %s140 = scalar_lea.vmem %s0, %s139
        %s141 = sadd.s32 %s16, %s17
        %s142 = smul.u32 2, %s141
      $region24: #{tpu_custom_call.1} parent=19 // pred_fallthru
        _
    $region20: #{tpu_custom_call.1} parent=5 // pred_fallthru
      _
    %p143 = scmp.le.s32.totalorder 1, %s8
    %p144 = scmp.lt.s32.totalorder %s8, 3
    %p145 = pnand %p143, %p144
    %p146 = pneg %p145
    // Predicated region
    $region25: #{tpu_custom_call.1} parent=5 // pred_check
      _
    $region26: #{tpu_custom_call.1} parent=5 // pred_check_branch
      %148 = sbr.rel (%p145) target = $region28
    $region27: #{tpu_custom_call.1} parent=5 // pred_region
      %s149 = ssub.s32 %s8, 1
      %s150 = sadd.s32 %s19, %s20
      %s151 = smul.u32 2, %s150
      %p152 = scmp.lt.s32.totalorder %s18, 1
      %s153 = scalar_select %p152, %s18, 1
      %p154 = scmp.lt.s32.totalorder %s151, 1
      %s155 = scalar_select %p154, %s151, 1
      %s156 = smul.addr %s153, 2
      %s157 = sadd.s32 %s155, %s156
      %s158 = smul.addr %s157, 4
      %s159 = scalar_lea.vmem %s0, %s158
      %p160 = pneg %p57
      %p161 = pneg %p54
      %p162 = pneg %p78
      %p163 = pneg %p75
      %p164 = pneg %p106
      %p165 = pneg %p103
      %p166 = scmp.lt.s32.totalorder %s18, 1
      %s167 = scalar_select %p166, %s18, 1
      %p168 = scmp.lt.s32.totalorder %s19, 0
      %s169 = scalar_select %p168, %s19, 0
      %s170 = smul.addr %s169, 8
      %s171 = smul.addr %s167, 8
      %s172 = sadd.s32 %s170, %s171
      %s173 = smul.addr %s172, 8
      %s174 = scalar_lea.vmem %s2, %s173
      %s175 = sadd.s32 %s19, %s20
      %s176 = smul.u32 2, %s175
      %p177 = scmp.lt.s32.totalorder %s18, 1
      %s178 = scalar_select %p177, %s18, 1
      %p179 = scmp.lt.s32.totalorder %s176, 1
      %s180 = scalar_select %p179, %s176, 1
      %s181 = smul.addr %s178, 2
      %s182 = sadd.s32 %s180, %s181
      %s183 = smul.addr %s182, 4
      %s184 = scalar_lea.vmem %s0, %s183
      %s185 = sadd.s32 %s19, %s20
      %s186 = smul.u32 2, %s185
      %p187 = scmp.lt.s32.totalorder %s18, 1
      %s188 = scalar_select %p187, %s18, 1
      %p189 = scmp.lt.s32.totalorder %s19, 0
      %s190 = scalar_select %p189, %s19, 0
      %s191 = smul.addr %s190, 8
      %s192 = smul.addr %s188, 8
      %s193 = sadd.s32 %s191, %s192
      %s194 = smul.addr %s193, 8
      %s195 = scalar_lea.vmem %s2, %s194
      %p196 = scmp.eq.s32.totalorder %s20, 0
      // Predicated region
      $region29: #{tpu_custom_call.1} parent=27 // pred_check
        %p197 = pneg %p196
      $region30: #{tpu_custom_call.1} parent=27 // pred_check_branch
        %199 = sbr.rel (%p197) target = $region32
      $region31: #{tpu_custom_call.1} parent=27 // pred_region
        %vm200 = vcmask 48128
        %201 = vst.msk [vmem:[%s195] sm:$0xff] %vm200, 0.0
        %202 = vst.msk [vmem:[%s195 + $0x8] sm:$0xff] %vm200, 0.0
        %203 = vst.msk [vmem:[%s195 + $0x10] sm:$0xff] %vm200, 0.0
        %204 = vst.msk [vmem:[%s195 + $0x18] sm:$0xff] %vm200, 0.0
        %205 = vst.msk [vmem:[%s195 + $0x20] sm:$0xff] %vm200, 0.0
        %206 = vst.msk [vmem:[%s195 + $0x28] sm:$0xff] %vm200, 0.0
        %207 = vst.msk [vmem:[%s195 + $0x30] sm:$0xff] %vm200, 0.0
        %208 = vst.msk [vmem:[%s195 + $0x38] sm:$0xff] %vm200, 0.0
      $region32: #{tpu_custom_call.1} parent=27 // pred_fallthru
        _
      %v209 = vld [vmem:[%s184] sm:$0xff]
      %v210 = vmul.f32 %v209, %v209
      %v212 = vcombine.high %v210, %v210
      %vm214 = vcmask 1043456
      %v215 = vsel %vm214, %v210, 0.0
      %v216 = vrot.slane %v215, 4
      %v217 = vadd.f32 %v215, %v216
      %v218 = vrot.slane %v217, 2
      %v219 = vadd.f32 %v217, %v218
      %v220 = vrot.slane %v219, 1
      %v221 = vadd.f32 %v219, %v220
      %v222 = vsel %vm214, %v212, 0.0
      %v223 = vrot.slane %v222, 4
      %v224 = vadd.f32 %v222, %v223
      %v225 = vrot.slane %v224, 2
      %v226 = vadd.f32 %v224, %v225
      %v227 = vrot.slane %v226, 1
      %v228 = vadd.f32 %v226, %v227
      %v230 = vcombine.high %v209, %v209
      %v232 = vsel %vm214, %v209, 1.0
      %v233 = vsel %vm214, %v230, 1.0
      %vm234 = vcmask 1044480
      %v235 = vsel %vm234, %v232, %v221
      %v236 = vsel %vm234, %v233, %v228
      %v237 = vld [vmem:[%s1] sm:$0xff]
      %v238 = vld [vmem:[%s1 + $0x8] sm:$0xff]
      %v239 = vld [vmem:[%s1 + $0x10] sm:$0xff]
      %v240 = vld [vmem:[%s1 + $0x18] sm:$0xff]
      %v241 = vld [vmem:[%s1 + $0x20] sm:$0xff]
      %v242 = vld [vmem:[%s1 + $0x28] sm:$0xff]
      %v243 = vld [vmem:[%s1 + $0x30] sm:$0xff]
      %v244 = vld [vmem:[%s1 + $0x38] sm:$0xff]
      %vm245 = vcmask 48128
      %v247 = vsel %vm245, %v237, 0
      %v250 = vsel %vm245, %v238, 0
      %v253 = vsel %vm245, %v239, 0
      %v256 = vsel %vm245, %v240, 0
      %v259 = vsel %vm245, %v241, 0
      %v262 = vsel %vm245, %v242, 0
      %v265 = vsel %vm245, %v243, 0
      %v268 = vsel %vm245, %v244, 0
      %vm270 = vcmask 1045504
      %v272 = vsel %vm270, %v235, 0
      %v275 = vsel %vm270, %v236, 0
      %277 = vmatprep.subr.mxu0 %v275
      %278 = vmatpush1.msra.mxu0 %v272
      %279 = vmatprep.subr.mxu0 0.0
      %280 = vmatpush1.msra.mxu0 0.0
      %281 = vmatprep.subr.mxu0 0.0
      %282 = vmatpush1.msra.mxu0 0.0
      %283 = vmatprep.subr.mxu0 0.0
      %284 = vmatpush1.msra.mxu0 0.0
      %285 = vmatprep.subr.mxu0 0.0
      %286 = vmatpush1.msra.mxu0 0.0
      %287 = vmatprep.subr.mxu0 0.0
      %288 = vmatpush1.msra.mxu0 0.0
      %289 = vmatprep.subr.mxu0 0.0
      %290 = vmatpush1.msra.mxu0 0.0
      %291 = vmatprep.subr.mxu0 0.0
      %292 = vmatpush1.msra.mxu0 0.0
      %293 = vmatprep.subr.mxu0 0.0
      %294 = vmatpush1.msra.mxu0 0.0
      %295 = vmatprep.subr.mxu0 0.0
      %296 = vmatpush1.msra.mxu0 0.0
      %297 = vmatprep.subr.mxu0 0.0
      %298 = vmatpush1.msra.mxu0 0.0
      %299 = vmatprep.subr.mxu0 0.0
      %300 = vmatpush1.msra.mxu0 0.0
      %301 = vmatprep.subr.mxu0 0.0
      %302 = vmatpush1.msra.mxu0 0.0
      %303 = vmatprep.subr.mxu0 0.0
      %304 = vmatpush1.msra.mxu0 0.0
      %305 = vmatprep.subr.mxu0 0.0
      %306 = vmatpush1.msra.mxu0 0.0
      %307 = vmatprep.subr.mxu0 0.0
      %308 = vmatpush1.msra.mxu0 0.0
      %309 = vmatprep.subr.mxu0 0.0
      %310 = vmatpush1.msra.mxu0 0.0
      %311 = vmatprep.subr.mxu0 0.0
      %312 = vmatpush1.msra.mxu0 0.0
      %313 = vmatprep.subr.mxu0 0.0
      %314 = vmatpush1.msra.mxu0 0.0
      %315 = vmatprep.subr.mxu0 0.0
      %316 = vmatpush1.msra.mxu0 0.0
      %317 = vmatprep.subr.mxu0 0.0
      %318 = vmatpush1.msra.mxu0 0.0
      %319 = vmatprep.subr.mxu0 0.0
      %320 = vmatpush1.msra.mxu0 0.0
      %321 = vmatprep.subr.mxu0 0.0
      %322 = vmatpush1.msra.mxu0 0.0
      %323 = vmatprep.subr.mxu0 0.0
      %324 = vmatpush1.msra.mxu0 0.0
      %325 = vmatprep.subr.mxu0 0.0
      %326 = vmatpush1.msra.mxu0 0.0
      %327 = vmatprep.subr.mxu0 0.0
      %328 = vmatpush1.msra.mxu0 0.0
      %329 = vmatprep.subr.mxu0 0.0
      %330 = vmatpush1.msra.mxu0 0.0
      %331 = vmatprep.subr.mxu0 0.0
      %332 = vmatpush1.msra.mxu0 0.0
      %333 = vmatprep.subr.mxu0 0.0
      %334 = vmatpush1.msra.mxu0 0.0
      %335 = vmatprep.subr.mxu0 0.0
      %336 = vmatpush1.msra.mxu0 0.0
      %337 = vmatprep.subr.mxu0 0.0
      %338 = vmatpush1.msra.mxu0 0.0
      %339 = vmatprep.subr.mxu0 0.0
      %340 = vmatpush1.msra.mxu0 0.0
      %341 = vmatprep.mubr.f32.mxu0 0.0
      %342 = vmatmul.mubr.f32.gmra.mrb[0].mxu0 %v247
      %v343 = vpop.f32.mrb[0].mxu0
      %v344 = vadd.f32 0.0, %v343
      %v345 = vpop.f32.mrb[0].mxu0
      %v346 = vadd.f32 0.0, %v345
      %347 = vmatprep.mubr.f32.mxu0 0.0
      %348 = vmatmul.mubr.f32.gmra.mrb[0].mxu0 %v250
      %v349 = vpop.f32.mrb[0].mxu0
      %v350 = vadd.f32 0.0, %v349
      %v351 = vpop.f32.mrb[0].mxu0
      %v352 = vadd.f32 0.0, %v351
      %353 = vmatprep.mubr.f32.mxu0 0.0
      %354 = vmatmul.mubr.f32.gmra.mrb[0].mxu0 %v253
      %v355 = vpop.f32.mrb[0].mxu0
      %v356 = vadd.f32 0.0, %v355
      %v357 = vpop.f32.mrb[0].mxu0
      %v358 = vadd.f32 0.0, %v357
      %359 = vmatprep.mubr.f32.mxu0 0.0
      %360 = vmatmul.mubr.f32.gmra.mrb[0].mxu0 %v256
      %v361 = vpop.f32.mrb[0].mxu0
      %v362 = vadd.f32 0.0, %v361
      %v363 = vpop.f32.mrb[0].mxu0
      %v364 = vadd.f32 0.0, %v363
      %365 = vmatprep.mubr.f32.mxu0 0.0
      %366 = vmatmul.mubr.f32.gmra.mrb[0].mxu0 %v259
      %v367 = vpop.f32.mrb[0].mxu0
      %v368 = vadd.f32 0.0, %v367
      %v369 = vpop.f32.mrb[0].mxu0
      %v370 = vadd.f32 0.0, %v369
      %371 = vmatprep.mubr.f32.mxu0 0.0
      %372 = vmatmul.mubr.f32.gmra.mrb[0].mxu0 %v262
      %v373 = vpop.f32.mrb[0].mxu0
      %v374 = vadd.f32 0.0, %v373
      %v375 = vpop.f32.mrb[0].mxu0
      %v376 = vadd.f32 0.0, %v375
      %377 = vmatprep.mubr.f32.mxu0 0.0
      %378 = vmatmul.mubr.f32.gmra.mrb[0].mxu0 %v265
      %v379 = vpop.f32.mrb[0].mxu0
      %v380 = vadd.f32 0.0, %v379
      %v381 = vpop.f32.mrb[0].mxu0
      %v382 = vadd.f32 0.0, %v381
      %383 = vmatprep.mubr.f32.mxu0 0.0
      %384 = vmatmul.mubr.f32.gmra.mrb[0].mxu0 %v268
      %v385 = vpop.f32.mrb[0].mxu0
      %v386 = vadd.f32 0.0, %v385
      %v387 = vpop.f32.mrb[0].mxu0
      %v388 = vadd.f32 0.0, %v387
      %389 = vdwg.mxu0
      %v390 = vmax.f32 %v344, %v356
      %v391 = vmax.f32 %v350, %v362
      %v392 = vmax.f32 %v390, %v368
      %v393 = vmax.f32 %v391, %v374
      %v394 = vmax.f32 %v392, %v380
      %v395 = vmax.f32 %v393, %v386
      %v396 = vmax.f32 %v394, %v395
      %v397 = vrot.slane %v396, 4
      %v398 = vmax.f32 %v396, %v397
      %v399 = vrot.slane %v398, 2
      %v400 = vmax.f32 %v398, %v399
      %v401 = vrot.slane %v400, 1
      %v402 = vmax.f32 %v400, %v401
      %v403 = vmax.f32 %v346, %v358
      %v404 = vmax.f32 %v352, %v364
      %v405 = vmax.f32 %v403, %v370
      %v406 = vmax.f32 %v404, %v376
      %v407 = vmax.f32 %v405, %v382
      %v408 = vmax.f32 %v406, %v388
      %v409 = vmax.f32 %v407, %v408
      %v410 = vrot.slane %v409, 4
      %v411 = vmax.f32 %v409, %v410
      %v412 = vrot.slane %v411, 2
      %v413 = vmax.f32 %v411, %v412
      %v414 = vrot.slane %v413, 1
      %v415 = vmax.f32 %v413, %v414
      %v416 = vsub.f32 %v344, %v402
      %v417 = vsub.f32 %v346, %v415
      %v418 = vsub.f32 %v350, %v402
      %v419 = vsub.f32 %v352, %v415
      %v420 = vsub.f32 %v356, %v402
      %v421 = vsub.f32 %v358, %v415
      %v422 = vsub.f32 %v362, %v402
      %v423 = vsub.f32 %v364, %v415
      %v424 = vsub.f32 %v368, %v402
      %v425 = vsub.f32 %v370, %v415
      %v426 = vsub.f32 %v374, %v402
      %v427 = vsub.f32 %v376, %v415
      %v428 = vsub.f32 %v380, %v402
      %v429 = vsub.f32 %v382, %v415
      %v430 = vsub.f32 %v386, %v402
      %v431 = vsub.f32 %v388, %v415
      %v432 = vmul.f32 %v416, 1.442695
      %v433 = vpow.pop %v432
      %v434 = vmul.f32 %v417, 1.442695
      %v435 = vpow.pop %v434
      %v436 = vmul.f32 %v418, 1.442695
      %v437 = vpow.pop %v436
      %v438 = vmul.f32 %v419, 1.442695
      %v439 = vpow.pop %v438
      %v440 = vmul.f32 %v420, 1.442695
      %v441 = vpow.pop %v440
      %v442 = vmul.f32 %v421, 1.442695
      %v443 = vpow.pop %v442
      %v444 = vmul.f32 %v422, 1.442695
      %v445 = vpow.pop %v444
      %v446 = vmul.f32 %v423, 1.442695
      %v447 = vpow.pop %v446
      %v448 = vmul.f32 %v424, 1.442695
      %v449 = vpow.pop %v448
      %v450 = vmul.f32 %v425, 1.442695
      %v451 = vpow.pop %v450
      %v452 = vmul.f32 %v426, 1.442695
      %v453 = vpow.pop %v452
      %v454 = vmul.f32 %v427, 1.442695
      %v455 = vpow.pop %v454
      %v456 = vmul.f32 %v428, 1.442695
      %v457 = vpow.pop %v456
      %v458 = vmul.f32 %v429, 1.442695
      %v459 = vpow.pop %v458
      %v460 = vmul.f32 %v430, 1.442695
      %v461 = vpow.pop %v460
      %v462 = vmul.f32 %v431, 1.442695
      %v463 = vpow.pop %v462
      %v464 = vadd.f32 %v433, %v437
      %v465 = vadd.f32 %v464, %v441
      %v466 = vadd.f32 %v465, %v445
      %v467 = vadd.f32 %v466, %v449
      %v468 = vadd.f32 %v467, %v453
      %v469 = vadd.f32 %v468, %v457
      %v470 = vadd.f32 %v469, %v461
      %v471 = vrot.slane %v470, 4
      %v472 = vadd.f32 %v470, %v471
      %v473 = vrot.slane %v472, 2
      %v474 = vadd.f32 %v472, %v473
      %v475 = vrot.slane %v474, 1
      %v476 = vadd.f32 %v474, %v475
      %v477 = vadd.f32 %v435, %v439
      %v478 = vadd.f32 %v477, %v443
      %v479 = vadd.f32 %v478, %v447
      %v480 = vadd.f32 %v479, %v451
      %v481 = vadd.f32 %v480, %v455
      %v482 = vadd.f32 %v481, %v459
      %v483 = vadd.f32 %v482, %v463
      %v484 = vrot.slane %v483, 4
      %v485 = vadd.f32 %v483, %v484
      %v486 = vrot.slane %v485, 2
      %v487 = vadd.f32 %v485, %v486
      %v488 = vrot.slane %v487, 1
      %v489 = vadd.f32 %v487, %v488
      %v490 = vrcp.pop %v476
      %v491 = vrcp.pop %v489
      %v492 = vmul.f32 %v433, %v490
      %v493 = vmul.f32 %v435, %v491
      %v494 = vmul.f32 %v437, %v490
      %v495 = vmul.f32 %v439, %v491
      %v496 = vmul.f32 %v441, %v490
      %v497 = vmul.f32 %v443, %v491
      %v498 = vmul.f32 %v445, %v490
      %v499 = vmul.f32 %v447, %v491
      %v500 = vmul.f32 %v449, %v490
      %v501 = vmul.f32 %v451, %v491
      %v502 = vmul.f32 %v453, %v490
      %v503 = vmul.f32 %v455, %v491
      %v504 = vmul.f32 %v457, %v490
      %v505 = vmul.f32 %v459, %v491
      %v506 = vmul.f32 %v461, %v490
      %v507 = vmul.f32 %v463, %v491
      %508 = vmatprep.subr.mxu0 %v236
      %509 = vmatpush1.xpose.msra.mxu0 %v235
      %510 = vmatprep.subr.mxu0 0.0
      %511 = vmatpush1.xpose.msra.mxu0 0.0
      %512 = vmatprep.subr.mxu0 0.0
      %513 = vmatpush1.xpose.msra.mxu0 0.0
      %514 = vmatprep.subr.mxu0 0.0
      %515 = vmatpush1.xpose.msra.mxu0 0.0
      %516 = vmatprep.subr.mxu0 0.0
      %517 = vmatpush1.xpose.msra.mxu0 0.0
      %518 = vmatprep.subr.mxu0 0.0
      %519 = vmatpush1.xpose.msra.mxu0 0.0
      %520 = vmatprep.subr.mxu0 0.0
      %521 = vmatpush1.xpose.msra.mxu0 0.0
      %522 = vmatprep.subr.mxu0 0.0
      %523 = vmatpush1.xpose.msra.mxu0 0.0
      %524 = vmatprep.subr.mxu0 0.0
      %525 = vmatpush1.xpose.msra.mxu0 0.0
      %526 = vmatprep.subr.mxu0 0.0
      %527 = vmatpush1.xpose.msra.mxu0 0.0
      %528 = vmatprep.subr.mxu0 0.0
      %529 = vmatpush1.xpose.msra.mxu0 0.0
      %530 = vmatprep.subr.mxu0 0.0
      %531 = vmatpush1.xpose.msra.mxu0 0.0
      %532 = vmatprep.subr.mxu0 0.0
      %533 = vmatpush1.xpose.msra.mxu0 0.0
      %534 = vmatprep.subr.mxu0 0.0
      %535 = vmatpush1.xpose.msra.mxu0 0.0
      %536 = vmatprep.subr.mxu0 0.0
      %537 = vmatpush1.xpose.msra.mxu0 0.0
      %538 = vmatprep.subr.mxu0 0.0
      %539 = vmatpush1.xpose.msra.mxu0 0.0
      %540 = vmatprep.subr.mxu0 0.0
      %541 = vmatpush1.xpose.msra.mxu0 0.0
      %542 = vmatprep.subr.mxu0 0.0
      %543 = vmatpush1.xpose.msra.mxu0 0.0
      %544 = vmatprep.subr.mxu0 0.0
      %545 = vmatpush1.xpose.msra.mxu0 0.0
      %546 = vmatprep.subr.mxu0 0.0
      %547 = vmatpush1.xpose.msra.mxu0 0.0
      %548 = vmatprep.subr.mxu0 0.0
      %549 = vmatpush1.xpose.msra.mxu0 0.0
      %550 = vmatprep.subr.mxu0 0.0
      %551 = vmatpush1.xpose.msra.mxu0 0.0
      %552 = vmatprep.subr.mxu0 0.0
      %553 = vmatpush1.xpose.msra.mxu0 0.0
      %554 = vmatprep.subr.mxu0 0.0
      %555 = vmatpush1.xpose.msra.mxu0 0.0
      %556 = vmatprep.subr.mxu0 0.0
      %557 = vmatpush1.xpose.msra.mxu0 0.0
      %558 = vmatprep.subr.mxu0 0.0
      %559 = vmatpush1.xpose.msra.mxu0 0.0
      %560 = vmatprep.subr.mxu0 0.0
      %561 = vmatpush1.xpose.msra.mxu0 0.0
      %562 = vmatprep.subr.mxu0 0.0
      %563 = vmatpush1.xpose.msra.mxu0 0.0
      %564 = vmatprep.subr.mxu0 0.0
      %565 = vmatpush1.xpose.msra.mxu0 0.0
      %566 = vmatprep.subr.mxu0 0.0
      %567 = vmatpush1.xpose.msra.mxu0 0.0
      %568 = vmatprep.subr.mxu0 0.0
      %569 = vmatpush1.xpose.msra.mxu0 0.0
      %570 = vmatprep.subr.mxu0 0.0
      %571 = vmatpush1.xpose.msra.mxu0 0.0
      %572 = vmatprep.mubr.f32.mxu0 %v493
      %573 = vmatmul.mubr.f32.gmra.mrb[0].mxu0 %v492
      %v574 = vpop.f32.mrb[0].mxu0
      %v575 = vadd.f32 0.0, %v574
      %v576 = vpop.f32.mrb[0].mxu0
      %577 = vmatprep.mubr.f32.mxu0 %v495
      %578 = vmatmul.mubr.f32.gmra.mrb[0].mxu0 %v494
      %v579 = vpop.f32.mrb[0].mxu0
      %v580 = vadd.f32 0.0, %v579
      %v581 = vpop.f32.mrb[0].mxu0
      %582 = vmatprep.mubr.f32.mxu0 %v497
      %583 = vmatmul.mubr.f32.gmra.mrb[0].mxu0 %v496
      %v584 = vpop.f32.mrb[0].mxu0
      %v585 = vadd.f32 0.0, %v584
      %v586 = vpop.f32.mrb[0].mxu0
      %587 = vmatprep.mubr.f32.mxu0 %v499
      %588 = vmatmul.mubr.f32.gmra.mrb[0].mxu0 %v498
      %v589 = vpop.f32.mrb[0].mxu0
      %v590 = vadd.f32 0.0, %v589
      %v591 = vpop.f32.mrb[0].mxu0
      %592 = vmatprep.mubr.f32.mxu0 %v501
      %593 = vmatmul.mubr.f32.gmra.mrb[0].mxu0 %v500
      %v594 = vpop.f32.mrb[0].mxu0
      %v595 = vadd.f32 0.0, %v594
      %v596 = vpop.f32.mrb[0].mxu0
      %597 = vmatprep.mubr.f32.mxu0 %v503
      %598 = vmatmul.mubr.f32.gmra.mrb[0].mxu0 %v502
      %v599 = vpop.f32.mrb[0].mxu0
      %v600 = vadd.f32 0.0, %v599
      %v601 = vpop.f32.mrb[0].mxu0
      %602 = vmatprep.mubr.f32.mxu0 %v505
      %603 = vmatmul.mubr.f32.gmra.mrb[0].mxu0 %v504
      %v604 = vpop.f32.mrb[0].mxu0
      %v605 = vadd.f32 0.0, %v604
      %v606 = vpop.f32.mrb[0].mxu0
      %607 = vmatprep.mubr.f32.mxu0 %v507
      %608 = vmatmul.mubr.f32.gmra.mrb[0].mxu0 %v506
      %v609 = vpop.f32.mrb[0].mxu0
      %v610 = vadd.f32 0.0, %v609
      %v611 = vpop.f32.mrb[0].mxu0
      %612 = vdwg.mxu0
      %v613 = vld [vmem:[%s195] sm:$0xff]
      %v614 = vld [vmem:[%s195 + $0x8] sm:$0xff]
      %v615 = vld [vmem:[%s195 + $0x10] sm:$0xff]
      %v616 = vld [vmem:[%s195 + $0x18] sm:$0xff]
      %v617 = vld [vmem:[%s195 + $0x20] sm:$0xff]
      %v618 = vld [vmem:[%s195 + $0x28] sm:$0xff]
      %v619 = vld [vmem:[%s195 + $0x30] sm:$0xff]
      %v620 = vld [vmem:[%s195 + $0x38] sm:$0xff]
      %v621 = vadd.f32 %v613, %v575
      %v622 = vadd.f32 %v614, %v580
      %v623 = vadd.f32 %v615, %v585
      %v624 = vadd.f32 %v616, %v590
      %v625 = vadd.f32 %v617, %v595
      %v626 = vadd.f32 %v618, %v600
      %v627 = vadd.f32 %v619, %v605
      %v628 = vadd.f32 %v620, %v610
      %629 = vst.msk [vmem:[%s195] sm:$0xff] %vm245, %v621
      %630 = vst.msk [vmem:[%s195 + $0x8] sm:$0xff] %vm245, %v622
      %631 = vst.msk [vmem:[%s195 + $0x10] sm:$0xff] %vm245, %v623
      %632 = vst.msk [vmem:[%s195 + $0x18] sm:$0xff] %vm245, %v624
      %633 = vst.msk [vmem:[%s195 + $0x20] sm:$0xff] %vm245, %v625
      %634 = vst.msk [vmem:[%s195 + $0x28] sm:$0xff] %vm245, %v626
      %635 = vst.msk [vmem:[%s195 + $0x30] sm:$0xff] %vm245, %v627
      %636 = vst.msk [vmem:[%s195 + $0x38] sm:$0xff] %vm245, %v628
      %p637 = scmp.lt.s32.totalorder %s18, 1
      %s638 = scalar_select %p637, %s18, 1
      %p639 = scmp.lt.s32.totalorder %s19, 0
      %s640 = scalar_select %p639, %s19, 0
      %s641 = smul.addr %s640, 8
      %s642 = smul.addr %s638, 8
      %s643 = sadd.s32 %s641, %s642
      %s644 = smul.addr %s643, 8
      %s645 = scalar_lea.vmem %s2, %s644
      // Predicated region
      $region33: #{tpu_custom_call.1} parent=27 // pred_check
        %p646 = pneg %p103
      $region34: #{tpu_custom_call.1} parent=27 // pred_check_branch
        %648 = sbr.rel (%p646) target = $region36
      $region35: #{tpu_custom_call.1} parent=27 // pred_region
        _
      $region36: #{tpu_custom_call.1} parent=27 // pred_fallthru
        _
    $region28: #{tpu_custom_call.1} parent=5 // pred_fallthru
      _
    %p649 = scmp.le.s32.totalorder 2, %s8
    // Predicated region
    $region37: #{tpu_custom_call.1} parent=5 // pred_check
      %p650 = pneg %p649
    $region38: #{tpu_custom_call.1} parent=5 // pred_check_branch
      %652 = sbr.rel (%p650) target = $region40
    $region39: #{tpu_custom_call.1} parent=5 // pred_region
      %s653 = ssub.s32 %s8, 2
      // Predicated region
      $region41: #{tpu_custom_call.1} parent=39 // pred_check
        %p654 = pneg %p109
      $region42: #{tpu_custom_call.1} parent=39 // pred_check_branch
        %656 = sbr.rel (%p654) target = $region44
      $region43: #{tpu_custom_call.1} parent=39 // pred_region
        %p657 = scmp.lt.s32.totalorder %s21, 1
        %s658 = scalar_select %p657, %s21, 1
        %p659 = scmp.lt.s32.totalorder %s22, 0
        %s660 = scalar_select %p659, %s22, 0
        %s661 = smul.addr %s660, 8
        %s662 = smul.addr %s658, 8
        %s663 = sadd.s32 %s661, %s662
        %s664 = smul.addr %s663, 8
        %s665 = scalar_lea.vmem %s2, %s664
      $region44: #{tpu_custom_call.1} parent=39 // pred_fallthru
        _
    $region40: #{tpu_custom_call.1} parent=5 // pred_fallthru
      _
  $region6: #{tpu_custom_call.1} parent=0 // loop_footer
    %s12 = sadd.s32 1, %s8
  $region7: #{tpu_custom_call.1} parent=0 // loop_footer_branch
    %7 = sbr.rel target = $region3
  $region8: #{tpu_custom_call.1} parent=0 // loop_exit
    _

</llo_original>
